<compile_context>
chip_gen: v6e
topology: v6e:2x2x1
jax: 0.10.0
libtpu: 0.0.40
codegen_flags: <defaults>
</compile_context>

<pallas_src>
import math
import functools

import jax
import jax.numpy as jnp
from jax.experimental import pallas as pl
from jax.experimental.pallas import tpu as pltpu


def _round_up(x, m):
    return ((x + m - 1) // m) * m


def _transe_kernel(dst_ref, src_ref, rel_ref, o_ref, *, p):
    # Blocks are (dim, TB): embedding components on the sublane axis, batch on
    # the lane axis.  Norm reduction over dim -> lane-dense (1, TB) row.
    d = (dst_ref[...].astype(jnp.float32)
         - src_ref[...].astype(jnp.float32)
         - rel_ref[...].astype(jnp.float32)
         + 1e-30)
    if p == 1:
        norm = jnp.sum(jnp.abs(d), axis=0, keepdims=True)
    elif p == 2:
        norm = jnp.sqrt(jnp.sum(d * d, axis=0, keepdims=True))
    else:
        pf = float(p)
        if pf == float(int(pf)) and int(pf) >= 1:
            # Integer p: |d|^p via repeated VPU multiplies (stays in the 4-wide
            # VALU slots; no per-element EUP transcendentals).
            ad = jnp.abs(d)
            pw = ad
            for _ in range(int(pf) - 1):
                pw = pw * ad
        else:
            # Non-integer p: one log+exp per element on the EUP.
            pw = jnp.exp(pf * jnp.log(jnp.abs(d)))
        s = jnp.sum(pw, axis=0, keepdims=True)
        # p-th root only on the already-reduced (1, TB) row (cheap).
        norm = jnp.exp(jnp.log(s) * (1.0 / pf))
    o_ref[...] = norm.astype(o_ref.dtype)


# Double-buffered input working-set budget (3 inputs x 2 buffers).  24 MiB is
# safe on every generation, incl. v7x (64 MiB physical VMEM).
_INPUT_VMEM_BUDGET = 24 * 1024 * 1024
_VMEM_LIMIT_BYTES = 40 * 1024 * 1024


def transe_forward(ent_embed, rel_embed, src, rel, dst, *, p=2, tb=8192):
    """Equivalent of TransEModule.forward(src, rel, dst) -> (B,) float32."""
    b = int(src.shape[0])
    dim = int(ent_embed.shape[1])
    in_itemsize = jnp.dtype(ent_embed.dtype).itemsize
    bytes_per_col = dim * in_itemsize

    # ---- Pad the tiny index vectors (not the activations) ------------------
    b_pad = _round_up(max(b, 1), 128)
    pad = b_pad - b
    src_i = jnp.asarray(src, jnp.int32)
    rel_i = jnp.asarray(rel, jnp.int32)
    dst_i = jnp.asarray(dst, jnp.int32)
    if pad:
        src_i = jnp.pad(src_i, (0, pad))
        rel_i = jnp.pad(rel_i, (0, pad))
        dst_i = jnp.pad(dst_i, (0, pad))

    # ---- Row gather (fast path) then transpose the small result ------------
    dst_e = jnp.take(ent_embed, dst_i, axis=0).T      # (dim, b_pad)
    src_e = jnp.take(ent_embed, src_i, axis=0).T      # (dim, b_pad)
    rel_e = jnp.take(rel_embed, rel_i, axis=0).T      # (dim, b_pad)

    # ---- Lane-tile selection: biggest tile within the VMEM budget ----------
    tb_cap = max(128, (_INPUT_VMEM_BUDGET // (6 * bytes_per_col)) // 128 * 128)
    tb_eff = max(128, min(tb, tb_cap, b_pad) // 128 * 128)
    # Give v7x's two TensorCores something to split when the batch allows it.
    if tb_eff >= b_pad and b_pad >= 256:
        tb_eff = _round_up(pl.cdiv(b_pad, 2), 128)
    grid = (pl.cdiv(b_pad, tb_eff),)

    in_spec = pl.BlockSpec((dim, tb_eff), lambda i: (0, i))
    out_spec = pl.BlockSpec((1, tb_eff), lambda i: (0, i))

    if p == 1:
        trans = 0
    elif p == 2:
        trans = b_pad
    elif float(p) == float(int(p)):
        trans = 2 * b_pad
    else:
        trans = 2 * b_pad * dim + 2 * b_pad
    cost = pl.CostEstimate(
        flops=5 * b_pad * dim,
        transcendentals=trans,
        bytes_accessed=3 * b_pad * bytes_per_col + b_pad * 4,
    )

    out = pl.pallas_call(
        functools.partial(_transe_kernel, p=p),
        grid_spec=pltpu.PrefetchScalarGridSpec(
            num_scalar_prefetch=0,
            grid=grid,
            in_specs=[in_spec, in_spec, in_spec],
            out_specs=out_spec,
        ),
        out_shape=jax.ShapeDtypeStruct((1, b_pad), jnp.float32),
        compiler_params=pltpu.CompilerParams(
            dimension_semantics=("parallel",),
            vmem_limit_bytes=_VMEM_LIMIT_BYTES,
        ),
        cost_estimate=cost,
    )(dst_e, src_e, rel_e)
    return out[0, :b]


def init_transe_params(key, dim, p, n_ent, n_rel):
    """Deterministic re-implementation of TransEModule.init_weight()."""
    bound = 6.0 / math.sqrt(dim)
    k_ent, k_rel = jax.random.split(key)
    ent = jax.random.uniform(k_ent, (n_ent, dim), jnp.float32, -bound, bound)
    rel = jax.random.uniform(k_rel, (n_rel, dim), jnp.float32, -bound, bound)
    # F.normalize(rel, p=p, dim=1)
    if p == 1:
        nrm = jnp.sum(jnp.abs(rel), axis=1, keepdims=True)
    elif p == 2:
        nrm = jnp.sqrt(jnp.sum(rel * rel, axis=1, keepdims=True))
    else:
        nrm = jnp.power(
            jnp.sum(jnp.power(jnp.abs(rel), float(p)), axis=1, keepdims=True),
            1.0 / float(p))
    rel = rel / jnp.maximum(nrm, 1e-12)
    return ent, rel


if __name__ == "__main__":
    dim, p, n_ent, n_rel, batch = 32, 2, 64, 16, 8

    key = jax.random.PRNGKey(0)
    k_param, k_src, k_rel, k_dst = jax.random.split(key, 4)

    ent_embed, rel_embed = init_transe_params(k_param, dim, p, n_ent, n_rel)
    src = jax.random.randint(k_src, (batch,), 0, n_ent, dtype=jnp.int32)
    rel = jax.random.randint(k_rel, (batch,), 0, n_rel, dtype=jnp.int32)
    dst = jax.random.randint(k_dst, (batch,), 0, n_ent, dtype=jnp.int32)

    out = transe_forward(ent_embed, rel_embed, src, rel, dst, p=p)
    out = jax.block_until_ready(out)

    # Pure-JAX reference of the PyTorch forward.
    diff = ent_embed[dst] - ent_embed[src] - rel_embed[rel] + 1e-30
    ref = jnp.sqrt(jnp.sum(diff * diff, axis=-1))

    assert out.shape == (batch,)
    assert jnp.allclose(out, ref, rtol=1e-5, atol=1e-5), (out, ref)
    print("KERNEL_OK")
</pallas_src>

<mosaic_0001>
module attributes {stable_mosaic.version = 11 : i64} {
  func.func @_transe_kernel(%arg0: i32, %arg1: memref<32x128xf32, #tpu.memory_space<vmem>>, %arg2: memref<32x128xf32, #tpu.memory_space<vmem>>, %arg3: memref<32x128xf32, #tpu.memory_space<vmem>>, %arg4: memref<1x128xf32, #tpu.memory_space<vmem>>) attributes {dimension_semantics = [#tpu.dimension_semantics<parallel>], iteration_bounds = array<i64: 1>, scalar_prefetch = 0 : i64, scratch_operands = 0 : i64, tpu.core_type = #tpu.core_type<tc>, window_params = [{transform_indices = @transform_0, window_bounds = array<i64: 32, 128>}, {transform_indices = @transform_1, window_bounds = array<i64: 32, 128>}, {transform_indices = @transform_2, window_bounds = array<i64: 32, 128>}, {transform_indices = @transform_3, window_bounds = array<i64: 1, 128>}]} {
    %c0 = arith.constant 0 : index
    %c0_0 = arith.constant 0 : index
    %0 = vector.load %arg1[%c0, %c0_0] : memref<32x128xf32, #tpu.memory_space<vmem>>, vector<32x128xf32>
    %c0_1 = arith.constant 0 : index
    %c0_2 = arith.constant 0 : index
    %1 = vector.load %arg2[%c0_1, %c0_2] : memref<32x128xf32, #tpu.memory_space<vmem>>, vector<32x128xf32>
    %2 = arith.subf %0, %1 : vector<32x128xf32>
    %c0_3 = arith.constant 0 : index
    %c0_4 = arith.constant 0 : index
    %3 = vector.load %arg3[%c0_3, %c0_4] : memref<32x128xf32, #tpu.memory_space<vmem>>, vector<32x128xf32>
    %4 = arith.subf %2, %3 : vector<32x128xf32>
    %cst = arith.constant 1.000000e-30 : f32
    %5 = vector.broadcast %cst : f32 to vector<32x128xf32>
    %6 = arith.addf %4, %5 : vector<32x128xf32>
    %7 = arith.mulf %6, %6 : vector<32x128xf32>
    %cst_5 = arith.constant dense<0.000000e+00> : vector<128xf32>
    %8 = vector.multi_reduction <add>, %7, %cst_5 [0] : vector<32x128xf32> to vector<128xf32>
    %9 = vector.shape_cast %8 : vector<128xf32> to vector<1x128xf32>
    %10 = math.sqrt %9 : vector<1x128xf32>
    %c0_6 = arith.constant 0 : index
    %c0_7 = arith.constant 0 : index
    %11 = vector.load %arg4[%c0_6, %c0_7] : memref<1x128xf32, #tpu.memory_space<vmem>>, vector<1x128xf32>
    tpu.vector_store %arg4[%c0_6, %c0_7], %10 {strides = array<i32>} : memref<1x128xf32, #tpu.memory_space<vmem>>, vector<1x128xf32>,
    return
  }
  func.func @transform_0(%arg0: i32) -> (i32, i32) {
    %c0_i32 = arith.constant 0 : i32
    %c0_i32_0 = arith.constant 0 : i32
    return %c0_i32, %arg0 : i32, i32
  }
  func.func @transform_1(%arg0: i32) -> (i32, i32) {
    %c0_i32 = arith.constant 0 : i32
    %c0_i32_0 = arith.constant 0 : i32
    return %c0_i32, %arg0 : i32, i32
  }
  func.func @transform_2(%arg0: i32) -> (i32, i32) {
    %c0_i32 = arith.constant 0 : i32
    %c0_i32_0 = arith.constant 0 : i32
    return %c0_i32, %arg0 : i32, i32
  }
  func.func @transform_3(%arg0: i32) -> (i32, i32) {
    %c0_i32 = arith.constant 0 : i32
    %c0_i32_0 = arith.constant 0 : i32
    return %c0_i32, %arg0 : i32, i32
  }
}

</mosaic_0001>

<llo_original>
// kernel: tpu_custom_call.1
$region0: #{tpu_custom_call.1}
  #allocation0 [shape = 'u32[]', space=smem, size = 0x4, offset = 0x4, fixed_abs, tag = 'smem constant byte address 0x4 - core index']
  #allocation1 [shape = 'u32[144,128]{1,0:T(1,128)}', space=vmem, size = 0x12000, scoped, tag = 'internal scratch']
  %s0 = inlined_call_operand.hbm [shape: f32[32,128], index: 0, kind: input, shape index: {}]
  %s1 = inlined_call_operand.hbm [shape: f32[32,128], index: 1, kind: input, shape index: {}]
  %s2 = inlined_call_operand.hbm [shape: f32[32,128], index: 2, kind: input, shape index: {}]
  %s3 = inlined_call_operand.hbm [shape: f32[1,128], index: 3, kind: output, shape index: {}]
  %s4 = sld [smem:[#allocation0]]
  $region34: #{tpu_custom_call.1} parent=0
    _
  %s6 = ssub.s32 1, %s4
  %s7 = scalar_select 0, %s6, %s4
  $region1: #{tpu_custom_call.1} parent=0
    #allocation2 [shape = 'u8[16384]{0}', space=vmem, size = 0x4000, scoped, tag = 'input window, operand 0, single buffered']
    #allocation3 [shape = 's32[1]{0}', space=sflag, size = 0x4, scoped, tag = 'scoped memory for tpu_custom_call.1']
    #allocation4 [shape = 's32[1]{0}', space=sflag, size = 0x4, scoped, tag = 'scoped memory for tpu_custom_call.1']
    #allocation5 [shape = 'u8[16384]{0}', space=vmem, size = 0x4000, scoped, tag = 'input window, operand 1, single buffered']
    #allocation6 [shape = 's32[1]{0}', space=sflag, size = 0x4, scoped, tag = 'scoped memory for tpu_custom_call.1']
    #allocation7 [shape = 'u8[16384]{0}', space=vmem, size = 0x4000, scoped, tag = 'input window, operand 2, single buffered']
    #allocation8 [shape = 'u8[512]{0}', space=vmem, size = 0x400, scoped, tag = 'output window, operand 0, single buffered']
    %8 = vsyncpa [#allocation3], 0
    %9 = vsyncpa [#allocation6], 0
    %10 = vsyncpa [#allocation4], 0
    // Predicated region
    $region2: #{tpu_custom_call.1} parent=1 // pred_check
      _
    $region3: #{tpu_custom_call.1} parent=1 // pred_check_branch
      %12 = sbr.rel (0) target = $region5
    $region4: #{tpu_custom_call.1} parent=1 // pred_region
      %s14 = ssub.s32 512, 512
      %15 = vsyncadd [#allocation3], %s14
      %s16 = sshll.u32 [#allocation2], 4
      %s17 = int_to_ptr.vmem [resolvable:$true] %s16
      %22 = dma.hbm_to_vmem [thread:$0]  %s0, 512, %s17, [#allocation3], 128, 128, 8
    $region5: #{tpu_custom_call.1} parent=1 // pred_fallthru
      _
    // Predicated region
    $region6: #{tpu_custom_call.1} parent=1 // pred_check
      _
    $region7: #{tpu_custom_call.1} parent=1 // pred_check_branch
      %24 = sbr.rel (0) target = $region9
    $region8: #{tpu_custom_call.1} parent=1 // pred_region
      %s26 = ssub.s32 512, 512
      %27 = vsyncadd [#allocation6], %s26
      %s28 = sshll.u32 [#allocation5], 4
      %s29 = int_to_ptr.vmem [resolvable:$true] %s28
      %34 = dma.hbm_to_vmem [thread:$0]  %s1, 512, %s29, [#allocation6], 128, 128, 8
    $region9: #{tpu_custom_call.1} parent=1 // pred_fallthru
      _
    // Predicated region
    $region10: #{tpu_custom_call.1} parent=1 // pred_check
      _
    $region11: #{tpu_custom_call.1} parent=1 // pred_check_branch
      %36 = sbr.rel (0) target = $region13
    $region12: #{tpu_custom_call.1} parent=1 // pred_region
      %s38 = ssub.s32 512, 512
      %39 = vsyncadd [#allocation6], %s38
      %s40 = sshll.u32 [#allocation7], 4
      %s41 = int_to_ptr.vmem [resolvable:$true] %s40
      %46 = dma.hbm_to_vmem [thread:$0]  %s2, 512, %s41, [#allocation6], 128, 128, 8
    $region13: #{tpu_custom_call.1} parent=1 // pred_fallthru
      _
    // Predicated region
    $region14: #{tpu_custom_call.1} parent=1 // pred_check
      _
    $region15: #{tpu_custom_call.1} parent=1 // pred_check_branch
      %48 = sbr.rel (0) target = $region17
    $region16: #{tpu_custom_call.1} parent=1 // pred_region
      %49 = dma.done [#allocation3], 512
    $region17: #{tpu_custom_call.1} parent=1 // pred_fallthru
      _
    // Predicated region
    $region18: #{tpu_custom_call.1} parent=1 // pred_check
      _
    $region19: #{tpu_custom_call.1} parent=1 // pred_check_branch
      %51 = sbr.rel (0) target = $region21
    $region20: #{tpu_custom_call.1} parent=1 // pred_region
      %52 = dma.done [#allocation6], 512
    $region21: #{tpu_custom_call.1} parent=1 // pred_fallthru
      _
    // Predicated region
    $region22: #{tpu_custom_call.1} parent=1 // pred_check
      _
    $region23: #{tpu_custom_call.1} parent=1 // pred_check_branch
      %54 = sbr.rel (0) target = $region25
    $region24: #{tpu_custom_call.1} parent=1 // pred_region
      %55 = dma.done [#allocation6], 512
    $region25: #{tpu_custom_call.1} parent=1 // pred_fallthru
      _
    %v56 = vld [vmem:[#allocation2] sm:$0xff]
    %v57 = vld [vmem:[#allocation2 + $0x8] sm:$0xff]
    %v58 = vld [vmem:[#allocation2 + $0x10] sm:$0xff]
    %v59 = vld [vmem:[#allocation2 + $0x18] sm:$0xff]
    %v60 = vld [vmem:[#allocation5] sm:$0xff]
    %v61 = vld [vmem:[#allocation5 + $0x8] sm:$0xff]
    %v62 = vld [vmem:[#allocation5 + $0x10] sm:$0xff]
    %v63 = vld [vmem:[#allocation5 + $0x18] sm:$0xff]
    %v64 = vsub.f32 %v56, %v60
    %v65 = vsub.f32 %v57, %v61
    %v66 = vsub.f32 %v58, %v62
    %v67 = vsub.f32 %v59, %v63
    %v68 = vld [vmem:[#allocation7] sm:$0xff]
    %v69 = vld [vmem:[#allocation7 + $0x8] sm:$0xff]
    %v70 = vld [vmem:[#allocation7 + $0x10] sm:$0xff]
    %v71 = vld [vmem:[#allocation7 + $0x18] sm:$0xff]
    %v72 = vsub.f32 %v64, %v68
    %v73 = vsub.f32 %v65, %v69
    %v74 = vsub.f32 %v66, %v70
    %v75 = vsub.f32 %v67, %v71
    %v76 = vadd.f32 %v72, 1e-30
    %v77 = vadd.f32 %v73, 1e-30
    %v78 = vadd.f32 %v74, 1e-30
    %v79 = vadd.f32 %v75, 1e-30
    %v80 = vmul.f32 %v76, %v76
    %v81 = vmul.f32 %v77, %v77
    %v82 = vmul.f32 %v78, %v78
    %v83 = vmul.f32 %v79, %v79
    %v84 = vadd.f32 %v80, %v81
    %v85 = vadd.f32 %v84, %v82
    %v86 = vadd.f32 %v85, %v83
    %v87 = vrot.slane %v86, 4
    %v88 = vadd.f32 %v86, %v87
    %v89 = vrot.slane %v88, 2
    %v90 = vadd.f32 %v88, %v89
    %v91 = vrot.slane %v90, 1
    %v92 = vadd.f32 %v90, %v91
    %v93 = vrsqrt.pop %v92
    %v94 = vmul.f32 %v92, %v93
    %vm95 = vcmp.eq.f32.partialorder %v92, inf
    %v96 = vsel %vm95, %v92, %v94
    %vm97 = vcmp.eq.f32.partialorder %v92, 0.0
    %v98 = vand.u32 %v92, 2147483648
    %v99 = vsel %vm97, %v98, %v96
    %100 = vst [vmem:[#allocation8] sm:$0x1] %v99
    // Predicated region
    $region26: #{tpu_custom_call.1} parent=1 // pred_check
      _
    $region27: #{tpu_custom_call.1} parent=1 // pred_check_branch
      %102 = sbr.rel (0) target = $region29
    $region28: #{tpu_custom_call.1} parent=1 // pred_region
      %s104 = ssub.s32 16, 16
      %105 = vsyncadd [#allocation4], %s104
      %s107 = sshll.u32 [#allocation8], 4
      %s108 = int_to_ptr.vmem [resolvable:$true] %s107
      %110 = dma.vmem_to_hbm [thread:$0]  %s108, 16, %s3, [#allocation4]
    $region29: #{tpu_custom_call.1} parent=1 // pred_fallthru
      _
    // Predicated region
    $region30: #{tpu_custom_call.1} parent=1 // pred_check
      _
    $region31: #{tpu_custom_call.1} parent=1 // pred_check_branch
      %112 = sbr.rel (0) target = $region33
    $region32: #{tpu_custom_call.1} parent=1 // pred_region
      %113 = dma.done [#allocation4], 16
    $region33: #{tpu_custom_call.1} parent=1 // pred_fallthru
      _
    %114 = vsyncpa [#allocation3], 1
    %115 = vsyncpa [#allocation6], 1
    %116 = vsyncpa [#allocation4], 1

</llo_original>
